<compile_context>
chip_gen: v7x
topology: tpu7x:2x2x1
jax: 0.10.0
libtpu: 0.0.40
codegen_flags: <defaults>
</compile_context>

<pallas_src>
import functools
import math

import jax
import jax.numpy as jnp
from jax.experimental import pallas as pl
from jax.experimental.pallas import tpu as pltpu


def _round_up(a: int, b: int) -> int:
    return ((a + b - 1) // b) * b


def _cdiv(a: int, b: int) -> int:
    return (a + b - 1) // b


@functools.lru_cache(maxsize=1)
def _vmem_capacity_bytes() -> int:
    try:
        return int(pltpu.get_tpu_info().vmem_capacity_bytes)
    except Exception:
        return 64 * 1024 * 1024  # safe floor (v7x per-core VMEM)


# --------------------------------------------------------------------------- #
# Kernels
# --------------------------------------------------------------------------- #
def ffn_kernel_single(x_ref, w1_ref, b1_ref, w2_ref, b2_ref, o_ref):
    """Fully-resident weights: one pass, no accumulator scratch.

    o = relu(x @ W1 + b1) @ W2 + b2 + x   (f32 math, single downcast)
    """
    x = x_ref[...]                                              # (TM, Dp)
    h = jnp.dot(x, w1_ref[...], preferred_element_type=jnp.float32)
    h = jnp.maximum(h + b1_ref[...], 0.0)                       # bias + ReLU in f32
    y = jnp.dot(h.astype(w2_ref.dtype), w2_ref[...],
                preferred_element_type=jnp.float32)
    o_ref[...] = (y + b2_ref[...] + x.astype(jnp.float32)).astype(o_ref.dtype)


def ffn_kernel_multi(x_ref, w1_ref, b1_ref, w2_ref, b2_ref, o_ref, acc_ref):
    """Hidden dim split across grid axis 1 (reduction) with an f32 accumulator.

    acc (+)= relu(x @ W1[:, k] + b1[k]) @ W2[k, :]
    last k:  o = acc + b2 + x
    First k step stores directly (no zero-init + RMW).
    """
    k = pl.program_id(1)
    x = x_ref[...]                                              # (TM, Dp)

    h = jnp.dot(x, w1_ref[...], preferred_element_type=jnp.float32)
    h = jnp.maximum(h + b1_ref[...], 0.0)
    partial = jnp.dot(h.astype(w2_ref.dtype), w2_ref[...],
                      preferred_element_type=jnp.float32)

    @pl.when(k == 0)
    def _store_first():
        acc_ref[...] = partial

    @pl.when(k != 0)
    def _accumulate():
        acc_ref[...] += partial

    @pl.when(k == pl.num_programs(1) - 1)
    def _finalize():
        o_ref[...] = (acc_ref[...] + b2_ref[...]
                      + x.astype(jnp.float32)).astype(o_ref.dtype)


# --------------------------------------------------------------------------- #
# VMEM-budget-driven tile selection
# --------------------------------------------------------------------------- #
def _select_tiles(M: int, D: int, H: int, itemsize: int):
    Dp = _round_up(D, 128)
    Hp_full = _round_up(H, 128)

    vmem_cap = _vmem_capacity_bytes()
    budget = max(vmem_cap - (16 << 20), 24 << 20)   # leave headroom for compiler

    def row_bytes(tm, multi):
        b = 4 * tm * Dp * itemsize          # x + out tiles, double-buffered
        if multi:
            b += tm * Dp * 4                 # f32 accumulator scratch
        return b

    def weight_bytes(th):
        # W1 + W2 (budget 2 buffers each, conservative) + biases
        return 4 * Dp * th * itemsize + 2 * (th + Dp) * itemsize

    tile_m_target = 512
    # >= 2 row tiles when possible so v7x megacore shards the parallel axis.
    n_rows = max(2 if M >= 16 else 1, _cdiv(M, tile_m_target))

    while True:
        tile_m = _round_up(_cdiv(M, n_rows), 8)      # near-equal row splits
        Mp = n_rows * tile_m

        # Preferred: full weight residency -> single k step, no accumulator,
        # weights DMA'd exactly once per call.
        if row_bytes(tile_m, multi=False) + weight_bytes(Hp_full) <= budget:
            return dict(tile_m=tile_m, Mp=Mp, Dp=Dp,
                        tile_h=Hp_full, Hp=Hp_full, multi=False)

        # Otherwise: largest lane-aligned hidden slice that fits next to this
        # row tile (multi-step reduction over H).
        avail = budget - row_bytes(tile_m, multi=True) - 2 * Dp * itemsize
        th = max(avail, 0) // (4 * Dp * itemsize + 2 * itemsize)
        th = (th // 128) * 128

        if th >= min(512, Hp_full) or tile_m <= 64:
            th = max(128, min(th, Hp_full))
            n_k = _cdiv(Hp_full, th)
            th = _round_up(_cdiv(Hp_full, n_k), 128)  # near-equal k slices
            return dict(tile_m=tile_m, Mp=Mp, Dp=Dp,
                        tile_h=th, Hp=n_k * th, multi=True)

        n_rows += 1   # shrink row tile to make room for a decent tile_h


# --------------------------------------------------------------------------- #
# Wrapper
# --------------------------------------------------------------------------- #
@functools.partial(jax.jit, static_argnames=("compute_dtype",))
def ffn_forward(x, w1, b1, w2, b2, *, compute_dtype=None):
    """x: (batch, seq, input_dim) -> (batch, seq, input_dim).

    Weights stored as (in_features, out_features); biases 1-D.
    Pass compute_dtype=jnp.bfloat16 for full-rate MXU on large models
    (f32 accumulation + f32 epilogue are kept).
    """
    B, S, D = x.shape
    Din, H = w1.shape
    assert Din == D and w2.shape == (H, D)
    assert b1.shape == (H,) and b2.shape == (D,)

    out_dtype = x.dtype
    if compute_dtype is not None:
        x = x.astype(compute_dtype)
        w1 = w1.astype(compute_dtype)
        w2 = w2.astype(compute_dtype)

    M = B * S
    itemsize = jnp.dtype(x.dtype).itemsize
    t = _select_tiles(M, D, H, itemsize)
    tile_m, Mp, Dp = t["tile_m"], t["Mp"], t["Dp"]
    tile_h, Hp, multi = t["tile_h"], t["Hp"], t["multi"]

    # --- pad only when actually needed ------------------------------------
    x2d = x.reshape(M, D)
    if (Mp, Dp) != (M, D):
        x2d = jnp.pad(x2d, ((0, Mp - M), (0, Dp - D)))
    w1p = w1 if (Dp, Hp) == (D, H) else jnp.pad(w1, ((0, Dp - D), (0, Hp - H)))
    w2p = w2 if (Hp, Dp) == (H, D) else jnp.pad(w2, ((0, Hp - H), (0, Dp - D)))
    b1p = (b1 if Hp == H else jnp.pad(b1, ((0, Hp - H),))).reshape(1, Hp)
    b2p = (b2 if Dp == D else jnp.pad(b2, ((0, Dp - D),))).reshape(1, Dp)

    # --- VMEM limit sized to actual block footprint ------------------------
    blk_bytes = (4 * tile_m * Dp * itemsize           # x + out tiles (2-buf)
                 + 4 * Dp * tile_h * itemsize         # W1 + W2 blocks (2-buf)
                 + 2 * (tile_h + Dp) * itemsize       # biases
                 + (tile_m * Dp * 4 if multi else 0)) # f32 accumulator
    vmem_cap = _vmem_capacity_bytes()
    vmem_limit = max(32 << 20,
                     min(vmem_cap - (2 << 20), int(blk_bytes * 1.25) + (4 << 20)))

    cost = pl.CostEstimate(
        flops=4 * Mp * Dp * Hp,                       # two matmuls
        transcendentals=0,
        bytes_accessed=(2 * Mp * Dp + 2 * Dp * Hp + Hp + Dp) * itemsize,
    )

    if multi:
        grid_spec = pltpu.PrefetchScalarGridSpec(
            num_scalar_prefetch=0,
            grid=(Mp // tile_m, Hp // tile_h),
            in_specs=[
                pl.BlockSpec((tile_m, Dp), lambda i, k: (i, 0)),   # x tile
                pl.BlockSpec((Dp, tile_h), lambda i, k: (0, k)),   # W1 slice
                pl.BlockSpec((1, tile_h), lambda i, k: (0, k)),    # b1 slice
                pl.BlockSpec((tile_h, Dp), lambda i, k: (k, 0)),   # W2 slice
                pl.BlockSpec((1, Dp), lambda i, k: (0, 0)),        # b2
            ],
            out_specs=pl.BlockSpec((tile_m, Dp), lambda i, k: (i, 0)),
            scratch_shapes=[pltpu.VMEM((tile_m, Dp), jnp.float32)],
        )
        kernel = ffn_kernel_multi
        dims = ("parallel", "arbitrary")
    else:
        grid_spec = pltpu.PrefetchScalarGridSpec(
            num_scalar_prefetch=0,
            grid=(Mp // tile_m,),
            in_specs=[
                pl.BlockSpec((tile_m, Dp), lambda i: (i, 0)),      # x tile
                pl.BlockSpec((Dp, Hp), lambda i: (0, 0)),          # W1 (resident)
                pl.BlockSpec((1, Hp), lambda i: (0, 0)),           # b1
                pl.BlockSpec((Hp, Dp), lambda i: (0, 0)),          # W2 (resident)
                pl.BlockSpec((1, Dp), lambda i: (0, 0)),           # b2
            ],
            out_specs=pl.BlockSpec((tile_m, Dp), lambda i: (i, 0)),
        )
        kernel = ffn_kernel_single
        dims = ("parallel",)

    out2d = pl.pallas_call(
        kernel,
        out_shape=jax.ShapeDtypeStruct((Mp, Dp), out_dtype),
        grid_spec=grid_spec,
        compiler_params=pltpu.CompilerParams(
            dimension_semantics=dims,
            vmem_limit_bytes=vmem_limit,
        ),
        cost_estimate=cost,
    )(x2d, w1p, b1p, w2p, b2p)

    return out2d[:M, :D].reshape(B, S, D)


def init_ffn_params(key, input_dim, hidden_dim, dtype=jnp.float32):
    """Deterministic init matching torch.nn.Linear's U(-1/sqrt(fan_in), ...)."""
    k1, k2, k3, k4 = jax.random.split(key, 4)
    bound1 = 1.0 / math.sqrt(input_dim)
    bound2 = 1.0 / math.sqrt(hidden_dim)
    # stored transposed vs. torch (in, out) so kernel does x @ W
    w1 = jax.random.uniform(k1, (input_dim, hidden_dim), dtype, -bound1, bound1)
    b1 = jax.random.uniform(k2, (hidden_dim,), dtype, -bound1, bound1)
    w2 = jax.random.uniform(k3, (hidden_dim, input_dim), dtype, -bound2, bound2)
    b2 = jax.random.uniform(k4, (input_dim,), dtype, -bound2, bound2)
    return w1, b1, w2, b2


if __name__ == "__main__":
    key = jax.random.PRNGKey(0)
    kx, kp = jax.random.split(key)

    batch, seq, input_dim, hidden_dim = 2, 8, 32, 64
    x = jax.random.normal(kx, (batch, seq, input_dim), jnp.float32)
    w1, b1, w2, b2 = init_ffn_params(kp, input_dim, hidden_dim)

    y = ffn_forward(x, w1, b1, w2, b2)
    y = jax.block_until_ready(y)

    # Pure-JAX reference check of the forward-pass semantics.
    h_ref = jnp.maximum(x @ w1 + b1, 0.0)
    y_ref = x + (h_ref @ w2 + b2)
    assert y.shape == (batch, seq, input_dim)
    assert jnp.allclose(y, y_ref, atol=1e-4, rtol=1e-4)

    print("KERNEL_OK")
</pallas_src>

<mosaic_0001>
module attributes {stable_mosaic.version = 11 : i64} {
  func.func @ffn_kernel_single(%arg0: i32, %arg1: memref<8x128xf32, #tpu.memory_space<vmem>>, %arg2: memref<128x128xf32, #tpu.memory_space<vmem>>, %arg3: memref<1x128xf32, #tpu.memory_space<vmem>>, %arg4: memref<128x128xf32, #tpu.memory_space<vmem>>, %arg5: memref<1x128xf32, #tpu.memory_space<vmem>>, %arg6: memref<8x128xf32, #tpu.memory_space<vmem>>) attributes {dimension_semantics = [#tpu.dimension_semantics<parallel>], iteration_bounds = array<i64: 2>, scalar_prefetch = 0 : i64, scratch_operands = 0 : i64, tpu.core_type = #tpu.core_type<tc>, window_params = [{transform_indices = @transform_0, window_bounds = array<i64: 8, 128>}, {pipeline_mode = #tpu.pipeline_mode<synchronous>, transform_indices = @transform_1, window_bounds = array<i64: 128, 128>}, {pipeline_mode = #tpu.pipeline_mode<synchronous>, transform_indices = @transform_2, window_bounds = array<i64: 1, 128>}, {pipeline_mode = #tpu.pipeline_mode<synchronous>, transform_indices = @transform_3, window_bounds = array<i64: 128, 128>}, {pipeline_mode = #tpu.pipeline_mode<synchronous>, transform_indices = @transform_4, window_bounds = array<i64: 1, 128>}, {transform_indices = @transform_5, window_bounds = array<i64: 8, 128>}]} {
    %c0 = arith.constant 0 : index
    %c0_0 = arith.constant 0 : index
    %0 = vector.load %arg1[%c0, %c0_0] : memref<8x128xf32, #tpu.memory_space<vmem>>, vector<8x128xf32>
    %c0_1 = arith.constant 0 : index
    %c0_2 = arith.constant 0 : index
    %1 = vector.load %arg2[%c0_1, %c0_2] : memref<128x128xf32, #tpu.memory_space<vmem>>, vector<128x128xf32>
    %cst = arith.constant dense<0.000000e+00> : vector<8x128xf32>
    %2 = tpu.matmul %0, %1, %cst {dimension_numbers = #tpu.dot_dimension_numbers<[1], [0], [0], [1], [0, 0, 1, 1], [], []>} : vector<8x128xf32>, vector<128x128xf32>, vector<8x128xf32> -> vector<8x128xf32>
    %c0_3 = arith.constant 0 : index
    %c0_4 = arith.constant 0 : index
    %3 = vector.load %arg3[%c0_3, %c0_4] : memref<1x128xf32, #tpu.memory_space<vmem>>, vector<1x128xf32>
    %4 = vector.broadcast %3 : vector<1x128xf32> to vector<8x128xf32>
    %5 = arith.addf %2, %4 : vector<8x128xf32>
    %cst_5 = arith.constant 0.000000e+00 : f32
    %6 = vector.broadcast %cst_5 : f32 to vector<8x128xf32>
    %7 = arith.maximumf %5, %6 : vector<8x128xf32>
    %c0_6 = arith.constant 0 : index
    %c0_7 = arith.constant 0 : index
    %8 = vector.load %arg4[%c0_6, %c0_7] : memref<128x128xf32, #tpu.memory_space<vmem>>, vector<128x128xf32>
    %cst_8 = arith.constant dense<0.000000e+00> : vector<8x128xf32>
    %9 = tpu.matmul %7, %8, %cst_8 {dimension_numbers = #tpu.dot_dimension_numbers<[1], [0], [0], [1], [0, 0, 1, 1], [], []>} : vector<8x128xf32>, vector<128x128xf32>, vector<8x128xf32> -> vector<8x128xf32>
    %c0_9 = arith.constant 0 : index
    %c0_10 = arith.constant 0 : index
    %10 = vector.load %arg5[%c0_9, %c0_10] : memref<1x128xf32, #tpu.memory_space<vmem>>, vector<1x128xf32>
    %11 = vector.broadcast %10 : vector<1x128xf32> to vector<8x128xf32>
    %12 = arith.addf %9, %11 : vector<8x128xf32>
    %13 = arith.addf %12, %0 : vector<8x128xf32>
    %c0_11 = arith.constant 0 : index
    %c0_12 = arith.constant 0 : index
    %14 = vector.load %arg6[%c0_11, %c0_12] : memref<8x128xf32, #tpu.memory_space<vmem>>, vector<8x128xf32>
    tpu.vector_store %arg6[%c0_11, %c0_12], %13 {strides = array<i32>} : memref<8x128xf32, #tpu.memory_space<vmem>>, vector<8x128xf32>,
    return
  }
  func.func @transform_0(%arg0: i32) -> (i32, i32) {
    %c0_i32 = arith.constant 0 : i32
    %c0_i32_0 = arith.constant 0 : i32
    return %arg0, %c0_i32 : i32, i32
  }
  func.func @transform_1(%arg0: i32) -> (i32, i32) {
    %c0_i32 = arith.constant 0 : i32
    %c0_i32_0 = arith.constant 0 : i32
    %c0_i32_1 = arith.constant 0 : i32
    return %c0_i32, %c0_i32_0 : i32, i32
  }
  func.func @transform_2(%arg0: i32) -> (i32, i32) {
    %c0_i32 = arith.constant 0 : i32
    %c0_i32_0 = arith.constant 0 : i32
    %c0_i32_1 = arith.constant 0 : i32
    return %c0_i32, %c0_i32_0 : i32, i32
  }
  func.func @transform_3(%arg0: i32) -> (i32, i32) {
    %c0_i32 = arith.constant 0 : i32
    %c0_i32_0 = arith.constant 0 : i32
    %c0_i32_1 = arith.constant 0 : i32
    return %c0_i32, %c0_i32_0 : i32, i32
  }
  func.func @transform_4(%arg0: i32) -> (i32, i32) {
    %c0_i32 = arith.constant 0 : i32
    %c0_i32_0 = arith.constant 0 : i32
    %c0_i32_1 = arith.constant 0 : i32
    return %c0_i32, %c0_i32_0 : i32, i32
  }
  func.func @transform_5(%arg0: i32) -> (i32, i32) {
    %c0_i32 = arith.constant 0 : i32
    %c0_i32_0 = arith.constant 0 : i32
    return %arg0, %c0_i32 : i32, i32
  }
}

</mosaic_0001>

<llo_original>
// kernel: ffn_forward.1
$region0: #{ffn_forward.1}
  #allocation0 [shape = 'u32[]', space=smem, size = 0x4, offset = 0x4, fixed_abs, tag = 'smem constant byte address 0x4 - core index']
  #allocation1 [shape = 'u32[144,128]{1,0:T(1,128)}', space=vmem, size = 0x12000, scoped, tag = 'internal scratch']
  %s0 = inlined_call_operand.vmem [shape: f32[16,128], index: 0, kind: input, shape index: {}]
  %s1 = inlined_call_operand.vmem [shape: f32[128,128], index: 1, kind: input, shape index: {}]
  %s2 = inlined_call_operand.vmem [shape: f32[1,128], index: 2, kind: input, shape index: {}]
  %s3 = inlined_call_operand.vmem [shape: f32[128,128], index: 3, kind: input, shape index: {}]
  %s4 = inlined_call_operand.vmem [shape: f32[1,128], index: 4, kind: input, shape index: {}]
  %s5 = inlined_call_operand.vmem [shape: f32[16,128], index: 5, kind: output, shape index: {}]
  %s6 = sld [smem:[#allocation0]]
  $region53: #{ffn_forward.1} parent=0
    _
  %s8 = ssub.s32 1, %s6
  %s9 = scalar_select 0, %s8, %s6
  loop: start=0, step=1, limit=4
  $region2: #{ffn_forward.1} parent=0 // loop_pre_header
    _
  $region3: #{ffn_forward.1} parent=0 // loop_header
    %s11 = sphi 0, %s15
    %p12 = scmp.ge.s32.totalorder %s11, 4
    %s21 = sphi 0, %s23
    %s24 = sphi 0, %s21
    %s25 = sphi 0, %s24
    %s41 = sphi 0, %s25
    %s45 = sphi 0, %s45
    %s47 = sphi 0, %s45
    %s48 = sphi 0, %s47
    %s62 = sphi 0, %s48
    %s66 = sphi 0, %s66
    %s68 = sphi 0, %s66
    %s69 = sphi 0, %s68
    %s83 = sphi 0, %s69
    %s87 = sphi 0, %s87
    %s89 = sphi 0, %s87
    %s90 = sphi 0, %s89
    %s104 = sphi 0, %s90
    %s108 = sphi 0, %s108
    %s110 = sphi 0, %s108
    %s111 = sphi 0, %s110
    %s125 = sphi 0, %s111
    %s131 = sphi 0, %s133
    %s134 = sphi 0, %s131
    %s135 = sphi 0, %s134
    %s151 = sphi 0, %s135
  $region4: #{ffn_forward.1} parent=0 // loop_header_branch
    %14 = sbr.rel (%p12) target = $region8
  $region5: #{ffn_forward.1} parent=0 // loop_body
    %s16 = ssub.s32 %s11, 1
    %s17 = ssub.s32 %s11, 2
    %s18 = sadd.s32 %s11, 1
    %s19 = ssub.s32 %s11, %s18
    %p20 = scmp.eq.s32.totalorder %s19, 0
    %s22 = sadd.s32 %s21, 1
    %s23 = scalar_select %p20, %s21, %s22
    %p26 = pneg %p20
    %p27 = scmp.eq.s32.totalorder %s11, 1
    %p28 = por %p26, %p27
    %p29 = scmp.ne.s32.totalorder %s21, %s24
    %p30 = scmp.eq.s32.totalorder %s11, 0
    %p31 = por %p29, %p30
    %p32 = scmp.ne.s32.totalorder %s21, %s24
    %p33 = scmp.eq.s32.totalorder %s16, 1
    %p34 = por %p32, %p33
    %p35 = scmp.ne.s32.totalorder %s24, %s25
    %p36 = scmp.eq.s32.totalorder %s16, 0
    %p37 = por %p35, %p36
    %p38 = scmp.ne.s32.totalorder %s24, %s25
    %p39 = scmp.eq.s32.totalorder %s17, 1
    %p40 = por %p38, %p39
    %p42 = scmp.ne.s32.totalorder %s25, %s41
    %p43 = scmp.eq.s32.totalorder %s17, 0
    %p44 = por %p42, %p43
    %s46 = sadd.s32 %s45, 1
    %p49 = scmp.eq.s32.totalorder %s11, 1
    %p50 = scmp.ne.s32.totalorder %s45, %s47
    %p51 = scmp.eq.s32.totalorder %s11, 0
    %p52 = por %p50, %p51
    %p53 = scmp.ne.s32.totalorder %s45, %s47
    %p54 = scmp.eq.s32.totalorder %s16, 1
    %p55 = por %p53, %p54
    %p56 = scmp.ne.s32.totalorder %s47, %s48
    %p57 = scmp.eq.s32.totalorder %s16, 0
    %p58 = por %p56, %p57
    %p59 = scmp.ne.s32.totalorder %s47, %s48
    %p60 = scmp.eq.s32.totalorder %s17, 1
    %p61 = por %p59, %p60
    %p63 = scmp.ne.s32.totalorder %s48, %s62
    %p64 = scmp.eq.s32.totalorder %s17, 0
    %p65 = por %p63, %p64
    %s67 = sadd.s32 %s66, 1
    %p70 = scmp.eq.s32.totalorder %s11, 1
    %p71 = scmp.ne.s32.totalorder %s66, %s68
    %p72 = scmp.eq.s32.totalorder %s11, 0
    %p73 = por %p71, %p72
    %p74 = scmp.ne.s32.totalorder %s66, %s68
    %p75 = scmp.eq.s32.totalorder %s16, 1
    %p76 = por %p74, %p75
    %p77 = scmp.ne.s32.totalorder %s68, %s69
    %p78 = scmp.eq.s32.totalorder %s16, 0
    %p79 = por %p77, %p78
    %p80 = scmp.ne.s32.totalorder %s68, %s69
    %p81 = scmp.eq.s32.totalorder %s17, 1
    %p82 = por %p80, %p81
    %p84 = scmp.ne.s32.totalorder %s69, %s83
    %p85 = scmp.eq.s32.totalorder %s17, 0
    %p86 = por %p84, %p85
    %s88 = sadd.s32 %s87, 1
    %p91 = scmp.eq.s32.totalorder %s11, 1
    %p92 = scmp.ne.s32.totalorder %s87, %s89
    %p93 = scmp.eq.s32.totalorder %s11, 0
    %p94 = por %p92, %p93
    %p95 = scmp.ne.s32.totalorder %s87, %s89
    %p96 = scmp.eq.s32.totalorder %s16, 1
    %p97 = por %p95, %p96
    %p98 = scmp.ne.s32.totalorder %s89, %s90
    %p99 = scmp.eq.s32.totalorder %s16, 0
    %p100 = por %p98, %p99
    %p101 = scmp.ne.s32.totalorder %s89, %s90
    %p102 = scmp.eq.s32.totalorder %s17, 1
    %p103 = por %p101, %p102
    %p105 = scmp.ne.s32.totalorder %s90, %s104
    %p106 = scmp.eq.s32.totalorder %s17, 0
    %p107 = por %p105, %p106
    %s109 = sadd.s32 %s108, 1
    %p112 = scmp.eq.s32.totalorder %s11, 1
    %p113 = scmp.ne.s32.totalorder %s108, %s110
    %p114 = scmp.eq.s32.totalorder %s11, 0
    %p115 = por %p113, %p114
    %p116 = scmp.ne.s32.totalorder %s108, %s110
    %p117 = scmp.eq.s32.totalorder %s16, 1
    %p118 = por %p116, %p117
    %p119 = scmp.ne.s32.totalorder %s110, %s111
    %p120 = scmp.eq.s32.totalorder %s16, 0
    %p121 = por %p119, %p120
    %p122 = scmp.ne.s32.totalorder %s110, %s111
    %p123 = scmp.eq.s32.totalorder %s17, 1
    %p124 = por %p122, %p123
    %p126 = scmp.ne.s32.totalorder %s111, %s125
    %p127 = scmp.eq.s32.totalorder %s17, 0
    %p128 = por %p126, %p127
    %s129 = ssub.s32 %s11, %s18
    %p130 = scmp.eq.s32.totalorder %s129, 0
    %s132 = sadd.s32 %s131, 1
    %s133 = scalar_select %p130, %s131, %s132
    %p136 = pneg %p130
    %p137 = scmp.eq.s32.totalorder %s11, 1
    %p138 = por %p136, %p137
    %p139 = scmp.ne.s32.totalorder %s131, %s134
    %p140 = scmp.eq.s32.totalorder %s11, 0
    %p141 = por %p139, %p140
    %p142 = scmp.ne.s32.totalorder %s131, %s134
    %p143 = scmp.eq.s32.totalorder %s16, 1
    %p144 = por %p142, %p143
    %p145 = scmp.ne.s32.totalorder %s134, %s135
    %p146 = scmp.eq.s32.totalorder %s16, 0
    %p147 = por %p145, %p146
    %p148 = scmp.ne.s32.totalorder %s134, %s135
    %p149 = scmp.eq.s32.totalorder %s17, 1
    %p150 = por %p148, %p149
    %p152 = scmp.ne.s32.totalorder %s135, %s151
    %p153 = scmp.eq.s32.totalorder %s17, 0
    %p154 = por %p152, %p153
    %p155 = scmp.le.s32.totalorder 1, %s11
    %p156 = scmp.lt.s32.totalorder %s11, 3
    %p157 = pnand %p155, %p156
    %p158 = pneg %p157
    // Predicated region
    $region9: #{ffn_forward.1} parent=5 // pred_check
      _
    $region10: #{ffn_forward.1} parent=5 // pred_check_branch
      %160 = sbr.rel (%p157) target = $region12
    $region11: #{ffn_forward.1} parent=5 // pred_region
      %s161 = ssub.s32 %s11, 1
      // Predicated region
      $region13: #{ffn_forward.1} parent=11 // pred_check
        %p162 = pneg %p58
      $region14: #{ffn_forward.1} parent=11 // pred_check_branch
        %164 = sbr.rel (%p162) target = $region16
      $region15: #{ffn_forward.1} parent=11 // pred_region
        _
      $region16: #{ffn_forward.1} parent=11 // pred_fallthru
        _
      // Predicated region
      $region17: #{ffn_forward.1} parent=11 // pred_check
        %p165 = pneg %p79
      $region18: #{ffn_forward.1} parent=11 // pred_check_branch
        %167 = sbr.rel (%p165) target = $region20
      $region19: #{ffn_forward.1} parent=11 // pred_region
        _
      $region20: #{ffn_forward.1} parent=11 // pred_fallthru
        _
      // Predicated region
      $region21: #{ffn_forward.1} parent=11 // pred_check
        %p168 = pneg %p100
      $region22: #{ffn_forward.1} parent=11 // pred_check_branch
        %170 = sbr.rel (%p168) target = $region24
      $region23: #{ffn_forward.1} parent=11 // pred_region
        _
      $region24: #{ffn_forward.1} parent=11 // pred_fallthru
        _
      // Predicated region
      $region25: #{ffn_forward.1} parent=11 // pred_check
        %p171 = pneg %p121
      $region26: #{ffn_forward.1} parent=11 // pred_check_branch
        %173 = sbr.rel (%p171) target = $region28
      $region27: #{ffn_forward.1} parent=11 // pred_region
        _
      $region28: #{ffn_forward.1} parent=11 // pred_fallthru
        _
    $region12: #{ffn_forward.1} parent=5 // pred_fallthru
      _
    %p174 = scmp.lt.s32.totalorder %s11, 2
    // Predicated region
    $region29: #{ffn_forward.1} parent=5 // pred_check
      %p175 = pneg %p174
    $region30: #{ffn_forward.1} parent=5 // pred_check_branch
      %177 = sbr.rel (%p175) target = $region32
    $region31: #{ffn_forward.1} parent=5 // pred_region
      // Predicated region
      $region33: #{ffn_forward.1} parent=31 // pred_check
        %p178 = pneg %p31
      $region34: #{ffn_forward.1} parent=31 // pred_check_branch
        %180 = sbr.rel (%p178) target = $region36
      $region35: #{ffn_forward.1} parent=31 // pred_region
        %p181 = scmp.lt.s32.totalorder %s11, 1
        %s182 = scalar_select %p181, %s11, 1
        %s183 = smul.addr %s182, 8
        %s184 = scalar_lea.vmem %s0, %s183
      $region36: #{ffn_forward.1} parent=31 // pred_fallthru
        _
    $region32: #{ffn_forward.1} parent=5 // pred_fallthru
      _
    %p185 = scmp.le.s32.totalorder 1, %s11
    %p186 = scmp.lt.s32.totalorder %s11, 3
    %p187 = pnand %p185, %p186
    %p188 = pneg %p187
    // Predicated region
    $region37: #{ffn_forward.1} parent=5 // pred_check
      _
    $region38: #{ffn_forward.1} parent=5 // pred_check_branch
      %190 = sbr.rel (%p187) target = $region40
    $region39: #{ffn_forward.1} parent=5 // pred_region
      %s191 = ssub.s32 %s11, 1
      %p192 = scmp.lt.s32.totalorder %s16, 1
      %s193 = scalar_select %p192, %s16, 1
      %s194 = smul.addr %s193, 8
      %s195 = scalar_lea.vmem %s0, %s194
      %p196 = pneg %p37
      %p197 = pneg %p34
      %p198 = pneg %p58
      %p199 = pneg %p55
      %p200 = pneg %p79
      %p201 = pneg %p76
      %p202 = pneg %p100
      %p203 = pneg %p97
      %p204 = pneg %p121
      %p205 = pneg %p118
      %p206 = pneg %p147
      %p207 = pneg %p144
      %p208 = scmp.lt.s32.totalorder %s16, 1
      %s209 = scalar_select %p208, %s16, 1
      %s210 = smul.addr %s209, 8
      %s211 = scalar_lea.vmem %s5, %s210
      %p212 = scmp.lt.s32.totalorder %s16, 1
      %s213 = scalar_select %p212, %s16, 1
      %s214 = smul.addr %s213, 8
      %s215 = scalar_lea.vmem %s0, %s214
      %p216 = scmp.lt.s32.totalorder %s16, 1
      %s217 = scalar_select %p216, %s16, 1
      %s218 = smul.addr %s217, 8
      %s219 = scalar_lea.vmem %s5, %s218
      %v220 = vld [vmem:[%s215] sm:$0xff]
      %v221 = vld [vmem:[%s1] sm:$0xff]
      %v222 = vld [vmem:[%s1 + $0x8] sm:$0xff]
      %v223 = vld [vmem:[%s1 + $0x10] sm:$0xff]
      %v224 = vld [vmem:[%s1 + $0x18] sm:$0xff]
      %v225 = vld [vmem:[%s1 + $0x20] sm:$0xff]
      %v226 = vld [vmem:[%s1 + $0x28] sm:$0xff]
      %v227 = vld [vmem:[%s1 + $0x30] sm:$0xff]
      %v228 = vld [vmem:[%s1 + $0x38] sm:$0xff]
      %v229 = vld [vmem:[%s1 + $0x40] sm:$0xff]
      %v230 = vld [vmem:[%s1 + $0x48] sm:$0xff]
      %v231 = vld [vmem:[%s1 + $0x50] sm:$0xff]
      %v232 = vld [vmem:[%s1 + $0x58] sm:$0xff]
      %v233 = vld [vmem:[%s1 + $0x60] sm:$0xff]
      %v234 = vld [vmem:[%s1 + $0x68] sm:$0xff]
      %v235 = vld [vmem:[%s1 + $0x70] sm:$0xff]
      %v236 = vld [vmem:[%s1 + $0x78] sm:$0xff]
      %v237 = vld [vmem:[%s2] sm:$0x1]
      %v239 = vlaneseq
      %v240 = vshrl.u32 %v239, 7
      %v241 = vsub.s32 0, %v240
      %v242 = vrot.slane %v237, %v241
      %244 = vmatprep.subr.mxu0 0.0
      %245 = vmatpush1.msra.mxu0 %v221
      %246 = vmatprep.subr.mxu0 0.0
      %247 = vmatpush1.msra.mxu0 %v222
      %248 = vmatprep.subr.mxu0 0.0
      %249 = vmatpush1.msra.mxu0 %v223
      %250 = vmatprep.subr.mxu0 0.0
      %251 = vmatpush1.msra.mxu0 %v224
      %252 = vmatprep.subr.mxu0 0.0
      %253 = vmatpush1.msra.mxu0 %v225
      %254 = vmatprep.subr.mxu0 0.0
      %255 = vmatpush1.msra.mxu0 %v226
      %256 = vmatprep.subr.mxu0 0.0
      %257 = vmatpush1.msra.mxu0 %v227
      %258 = vmatprep.subr.mxu0 0.0
      %259 = vmatpush1.msra.mxu0 %v228
      %260 = vmatprep.subr.mxu0 0.0
      %261 = vmatpush1.msra.mxu0 %v229
      %262 = vmatprep.subr.mxu0 0.0
      %263 = vmatpush1.msra.mxu0 %v230
      %264 = vmatprep.subr.mxu0 0.0
      %265 = vmatpush1.msra.mxu0 %v231
      %266 = vmatprep.subr.mxu0 0.0
      %267 = vmatpush1.msra.mxu0 %v232
      %268 = vmatprep.subr.mxu0 0.0
      %269 = vmatpush1.msra.mxu0 %v233
      %270 = vmatprep.subr.mxu0 0.0
      %271 = vmatpush1.msra.mxu0 %v234
      %272 = vmatprep.subr.mxu0 0.0
      %273 = vmatpush1.msra.mxu0 %v235
      %274 = vmatprep.subr.mxu0 0.0
      %275 = vmatpush1.msra.mxu0 %v236
      %276 = vmatprep.subr.mxu0 0.0
      %277 = vmatpush1.msra.mxu0 0.0
      %278 = vmatprep.subr.mxu0 0.0
      %279 = vmatpush1.msra.mxu0 0.0
      %280 = vmatprep.subr.mxu0 0.0
      %281 = vmatpush1.msra.mxu0 0.0
      %282 = vmatprep.subr.mxu0 0.0
      %283 = vmatpush1.msra.mxu0 0.0
      %284 = vmatprep.subr.mxu0 0.0
      %285 = vmatpush1.msra.mxu0 0.0
      %286 = vmatprep.subr.mxu0 0.0
      %287 = vmatpush1.msra.mxu0 0.0
      %288 = vmatprep.subr.mxu0 0.0
      %289 = vmatpush1.msra.mxu0 0.0
      %290 = vmatprep.subr.mxu0 0.0
      %291 = vmatpush1.msra.mxu0 0.0
      %292 = vmatprep.subr.mxu0 0.0
      %293 = vmatpush1.msra.mxu0 0.0
      %294 = vmatprep.subr.mxu0 0.0
      %295 = vmatpush1.msra.mxu0 0.0
      %296 = vmatprep.subr.mxu0 0.0
      %297 = vmatpush1.msra.mxu0 0.0
      %298 = vmatprep.subr.mxu0 0.0
      %299 = vmatpush1.msra.mxu0 0.0
      %300 = vmatprep.subr.mxu0 0.0
      %301 = vmatpush1.msra.mxu0 0.0
      %302 = vmatprep.subr.mxu0 0.0
      %303 = vmatpush1.msra.mxu0 0.0
      %304 = vmatprep.subr.mxu0 0.0
      %305 = vmatpush1.msra.mxu0 0.0
      %306 = vmatprep.subr.mxu0 0.0
      %307 = vmatpush1.msra.mxu0 0.0
      %308 = vmatprep.mubr.f32.mxu0 0.0
      %309 = vmatmul.mubr.f32.gmra.mrb[0].mxu0 %v220
      %v310 = vpop.f32.mrb[0].mxu0
      %v311 = vadd.f32 %v242, %v310
      %v312 = vpop.f32.mrb[0].mxu0
      %313 = vdwg.mxu0
      %v314 = vmax.f32 %v311, 0.0
      %v315 = vld [vmem:[%s3] sm:$0xff]
      %v316 = vld [vmem:[%s3 + $0x8] sm:$0xff]
      %v317 = vld [vmem:[%s3 + $0x10] sm:$0xff]
      %v318 = vld [vmem:[%s3 + $0x18] sm:$0xff]
      %v319 = vld [vmem:[%s3 + $0x20] sm:$0xff]
      %v320 = vld [vmem:[%s3 + $0x28] sm:$0xff]
      %v321 = vld [vmem:[%s3 + $0x30] sm:$0xff]
      %v322 = vld [vmem:[%s3 + $0x38] sm:$0xff]
      %v323 = vld [vmem:[%s3 + $0x40] sm:$0xff]
      %v324 = vld [vmem:[%s3 + $0x48] sm:$0xff]
      %v325 = vld [vmem:[%s3 + $0x50] sm:$0xff]
      %v326 = vld [vmem:[%s3 + $0x58] sm:$0xff]
      %v327 = vld [vmem:[%s3 + $0x60] sm:$0xff]
      %v328 = vld [vmem:[%s3 + $0x68] sm:$0xff]
      %v329 = vld [vmem:[%s3 + $0x70] sm:$0xff]
      %v330 = vld [vmem:[%s3 + $0x78] sm:$0xff]
      %v331 = vld [vmem:[%s4] sm:$0x1]
      %v333 = vlaneseq
      %v334 = vshrl.u32 %v333, 7
      %v335 = vsub.s32 0, %v334
      %v336 = vrot.slane %v331, %v335
      %338 = vmatprep.subr.mxu0 0.0
      %339 = vmatpush1.msra.mxu0 %v315
      %340 = vmatprep.subr.mxu0 0.0
      %341 = vmatpush1.msra.mxu0 %v316
      %342 = vmatprep.subr.mxu0 0.0
      %343 = vmatpush1.msra.mxu0 %v317
      %344 = vmatprep.subr.mxu0 0.0
      %345 = vmatpush1.msra.mxu0 %v318
      %346 = vmatprep.subr.mxu0 0.0
      %347 = vmatpush1.msra.mxu0 %v319
      %348 = vmatprep.subr.mxu0 0.0
      %349 = vmatpush1.msra.mxu0 %v320
      %350 = vmatprep.subr.mxu0 0.0
      %351 = vmatpush1.msra.mxu0 %v321
      %352 = vmatprep.subr.mxu0 0.0
      %353 = vmatpush1.msra.mxu0 %v322
      %354 = vmatprep.subr.mxu0 0.0
      %355 = vmatpush1.msra.mxu0 %v323
      %356 = vmatprep.subr.mxu0 0.0
      %357 = vmatpush1.msra.mxu0 %v324
      %358 = vmatprep.subr.mxu0 0.0
      %359 = vmatpush1.msra.mxu0 %v325
      %360 = vmatprep.subr.mxu0 0.0
      %361 = vmatpush1.msra.mxu0 %v326
      %362 = vmatprep.subr.mxu0 0.0
      %363 = vmatpush1.msra.mxu0 %v327
      %364 = vmatprep.subr.mxu0 0.0
      %365 = vmatpush1.msra.mxu0 %v328
      %366 = vmatprep.subr.mxu0 0.0
      %367 = vmatpush1.msra.mxu0 %v329
      %368 = vmatprep.subr.mxu0 0.0
      %369 = vmatpush1.msra.mxu0 %v330
      %370 = vmatprep.subr.mxu0 0.0
      %371 = vmatpush1.msra.mxu0 0.0
      %372 = vmatprep.subr.mxu0 0.0
      %373 = vmatpush1.msra.mxu0 0.0
      %374 = vmatprep.subr.mxu0 0.0
      %375 = vmatpush1.msra.mxu0 0.0
      %376 = vmatprep.subr.mxu0 0.0
      %377 = vmatpush1.msra.mxu0 0.0
      %378 = vmatprep.subr.mxu0 0.0
      %379 = vmatpush1.msra.mxu0 0.0
      %380 = vmatprep.subr.mxu0 0.0
      %381 = vmatpush1.msra.mxu0 0.0
      %382 = vmatprep.subr.mxu0 0.0
      %383 = vmatpush1.msra.mxu0 0.0
      %384 = vmatprep.subr.mxu0 0.0
      %385 = vmatpush1.msra.mxu0 0.0
      %386 = vmatprep.subr.mxu0 0.0
      %387 = vmatpush1.msra.mxu0 0.0
      %388 = vmatprep.subr.mxu0 0.0
      %389 = vmatpush1.msra.mxu0 0.0
      %390 = vmatprep.subr.mxu0 0.0
      %391 = vmatpush1.msra.mxu0 0.0
      %392 = vmatprep.subr.mxu0 0.0
      %393 = vmatpush1.msra.mxu0 0.0
      %394 = vmatprep.subr.mxu0 0.0
      %395 = vmatpush1.msra.mxu0 0.0
      %396 = vmatprep.subr.mxu0 0.0
      %397 = vmatpush1.msra.mxu0 0.0
      %398 = vmatprep.subr.mxu0 0.0
      %399 = vmatpush1.msra.mxu0 0.0
      %400 = vmatprep.subr.mxu0 0.0
      %401 = vmatpush1.msra.mxu0 0.0
      %402 = vmatprep.mubr.f32.mxu0 0.0
      %403 = vmatmul.mubr.f32.gmra.mrb[0].mxu0 %v314
      %v404 = vpop.f32.mrb[0].mxu0
      %v405 = vadd.f32 %v336, %v404
      %v406 = vpop.f32.mrb[0].mxu0
      %407 = vdwg.mxu0
      %v408 = vadd.f32 %v405, %v220
      %409 = vst [vmem:[%s219] sm:$0xff] %v408
      %p410 = scmp.lt.s32.totalorder %s16, 1
      %s411 = scalar_select %p410, %s16, 1
      %s412 = smul.addr %s411, 8
      %s413 = scalar_lea.vmem %s5, %s412
      // Predicated region
      $region41: #{ffn_forward.1} parent=39 // pred_check
        %p414 = pneg %p144
      $region42: #{ffn_forward.1} parent=39 // pred_check_branch
        %416 = sbr.rel (%p414) target = $region44
      $region43: #{ffn_forward.1} parent=39 // pred_region
        _
      $region44: #{ffn_forward.1} parent=39 // pred_fallthru
        _
    $region40: #{ffn_forward.1} parent=5 // pred_fallthru
      _
    %p417 = scmp.le.s32.totalorder 2, %s11
    // Predicated region
    $region45: #{ffn_forward.1} parent=5 // pred_check
      %p418 = pneg %p417
    $region46: #{ffn_forward.1} parent=5 // pred_check_branch
      %420 = sbr.rel (%p418) target = $region48
    $region47: #{ffn_forward.1} parent=5 // pred_region
      %s421 = ssub.s32 %s11, 2
      // Predicated region
      $region49: #{ffn_forward.1} parent=47 // pred_check
        %p422 = pneg %p150
      $region50: #{ffn_forward.1} parent=47 // pred_check_branch
        %424 = sbr.rel (%p422) target = $region52
      $region51: #{ffn_forward.1} parent=47 // pred_region
        %p425 = scmp.lt.s32.totalorder %s17, 1
        %s426 = scalar_select %p425, %s17, 1
        %s427 = smul.addr %s426, 8
        %s428 = scalar_lea.vmem %s5, %s427
      $region52: #{ffn_forward.1} parent=47 // pred_fallthru
        _
    $region48: #{ffn_forward.1} parent=5 // pred_fallthru
      _
  $region6: #{ffn_forward.1} parent=0 // loop_footer
    %s15 = sadd.s32 1, %s11
  $region7: #{ffn_forward.1} parent=0 // loop_footer_branch
    %10 = sbr.rel target = $region3
  $region8: #{ffn_forward.1} parent=0 // loop_exit
    _

</llo_original>
